<compile_context>
chip_gen: v6e
topology: v6e:2x2x1
jax: 0.10.0
libtpu: 0.0.40
codegen_flags: <defaults>
</compile_context>

<pallas_src>
import functools

import jax
import jax.numpy as jnp
from jax.experimental import pallas as pl
from jax.experimental.pallas import tpu as pltpu


def _center_loss_kernel(feat_ref, label_ref, centers_ref, out_ref,
                        *, n_valid, tile_n):
    i = pl.program_id(0)
    n_tiles = pl.num_programs(0)

    f = feat_ref[...].astype(jnp.float32)          # (TILE_N, D)
    lab = label_ref[...]                           # (TILE_N, 1) int32
    cen = centers_ref[...].astype(jnp.float32)     # (K, D), resident in VMEM

    tn = f.shape[0]
    k = cen.shape[0]

    if k >= 128:
        # Direct VMEM gather: O(TILE_N * D), keeps the kernel HBM-BW bound.
        idx = jnp.clip(lab[:, 0], 0, k - 1)        # clamp (also guards ragged tail garbage)
        c_sel = jnp.take(cen, idx, axis=0)         # (TILE_N, D)
    else:
        # Tiny-K fallback: one-hot @ centers on the MXU.
        cls = jax.lax.broadcasted_iota(jnp.int32, (tn, k), 1)
        onehot = (cls == lab).astype(jnp.float32)
        c_sel = jnp.dot(onehot, cen, preferred_element_type=jnp.float32)

    diff = f - c_sel                               # (TILE_N, D)

    def _write(partial):
        # Lane-dense (1, 128) store of the per-tile partial sum.
        out_ref[...] = jnp.broadcast_to(partial, (1, 128)).astype(jnp.float32)

    if n_valid % tile_n == 0:
        # Batch divides the tile evenly: no masking anywhere.
        _write(jnp.sum(diff * diff))
    else:
        @pl.when(i < n_tiles - 1)
        def _():
            _write(jnp.sum(diff * diff))

        @pl.when(i == n_tiles - 1)
        def _():
            # Mask padded/stale rows of the ragged last block so they contribute 0.
            row_ids = i * tile_n + jax.lax.broadcasted_iota(jnp.int32, (tn, 1), 0)
            dm = jnp.where(row_ids < n_valid, diff, 0.0)
            _write(jnp.sum(dm * dm))


def _round_up(x, m):
    return ((x + m - 1) // m) * m


def center_loss(feat, labels, centers):
    """feat: (N, ...) float (flattened to (N, D)), labels: (N,) int,
    centers: (num_classes, D) float. Returns scalar loss."""
    n = feat.shape[0]
    feat2d = feat.reshape(n, -1).astype(jnp.float32)   # feat.view(N,1,1,-1).squeeze()
    d = feat2d.shape[1]
    k, d_c = centers.shape
    if d != d_c:
        raise ValueError(
            "Center's dim: {0} should be equal to input feature's dim: {1}".format(d_c, d)
        )

    lab2d = labels.reshape(n, 1).astype(jnp.int32)
    centers_f32 = centers.astype(jnp.float32)

    # --- Batch tile sized from a VMEM byte budget (~2 MiB per feat buffer). ---
    feat_buf_budget = 2 * 1024 * 1024                  # bytes per (double-buffered) feat tile
    budget_rows = max(8, (feat_buf_budget // (4 * d)) // 8 * 8)
    if n < 8:
        tile_n = n                                     # single full block (== array dim)
    else:
        tile_n = max(8, min(budget_rows, (n // 8) * 8))
    num_tiles = pl.cdiv(n, tile_n)

    # --- Cost / VMEM accounting ---
    flops = 3 * n * d + (0 if k >= 128 else 2 * n * k * d)
    bytes_accessed = n * d * 4 + n * 4 + k * d * 4 + num_tiles * 128 * 4
    cost = pl.CostEstimate(flops=flops, transcendentals=0,
                           bytes_accessed=bytes_accessed)

    footprint = (2 * tile_n * d * 4        # double-buffered feat tiles
                 + 2 * tile_n * 4          # double-buffered label tiles
                 + 2 * k * d * 4           # centers (resident, conservatively x2 buffers)
                 + 2 * 128 * 4)            # output partials
    vmem_limit = int(min(128 * 1024 * 1024, max(2 * footprint, 8 * 1024 * 1024)))

    kernel = functools.partial(_center_loss_kernel, n_valid=n, tile_n=tile_n)

    partials = pl.pallas_call(
        kernel,
        out_shape=jax.ShapeDtypeStruct((num_tiles, 128), jnp.float32),
        grid_spec=pltpu.PrefetchScalarGridSpec(
            num_scalar_prefetch=0,
            grid=(num_tiles,),
            in_specs=[
                pl.BlockSpec((tile_n, d), lambda i: (i, 0)),   # feature tile
                pl.BlockSpec((tile_n, 1), lambda i: (i, 0)),   # labels tile
                pl.BlockSpec((k, d), lambda i: (0, 0)),        # centers (grid-invariant)
            ],
            out_specs=pl.BlockSpec((1, 128), lambda i: (i, 0)),
        ),
        compiler_params=pltpu.CompilerParams(
            dimension_semantics=("parallel",),                 # independent per-tile partials
            vmem_limit_bytes=vmem_limit,
        ),
        cost_estimate=cost,
    )(feat2d, lab2d, centers_f32)

    # Final reduction of per-tile partials in plain JAX; mean over full batch, / 2.
    return jnp.sum(partials[:, 0]) / (2.0 * n)


if __name__ == "__main__":
    num_classes = 10
    feat_dim = 32
    batch = 8

    key = jax.random.PRNGKey(0)
    k_feat, k_lab, k_cen = jax.random.split(key, 3)
    feat = jax.random.normal(k_feat, (batch, feat_dim), dtype=jnp.float32)
    labels = jax.random.randint(k_lab, (batch,), 0, num_classes, dtype=jnp.int32)
    # nn.Parameter(torch.randn(num_classes, feat_dim)) equivalent
    centers = jax.random.normal(k_cen, (num_classes, feat_dim), dtype=jnp.float32)

    loss = center_loss(feat, labels, centers)
    jax.block_until_ready(loss)

    # pure-JAX reference of the forward pass
    centers_pred = centers[labels]
    loss_ref = jnp.mean(jnp.sum((feat - centers_pred) ** 2, axis=1)) / 2.0
    assert jnp.allclose(loss, loss_ref, rtol=1e-5, atol=1e-5), (loss, loss_ref)

    print("KERNEL_OK")
</pallas_src>

<mosaic_0001>
module attributes {stable_mosaic.version = 11 : i64} {
  func.func @_center_loss_kernel(%arg0: i32, %arg1: memref<8x32xf32, #tpu.memory_space<vmem>>, %arg2: memref<8x1xi32, #tpu.memory_space<vmem>>, %arg3: memref<10x32xf32, #tpu.memory_space<vmem>>, %arg4: memref<1x128xf32, #tpu.memory_space<vmem>>) attributes {dimension_semantics = [#tpu.dimension_semantics<parallel>], iteration_bounds = array<i64: 1>, scalar_prefetch = 0 : i64, scratch_operands = 0 : i64, tpu.core_type = #tpu.core_type<tc>, window_params = [{transform_indices = @transform_0, window_bounds = array<i64: 8, 32>}, {transform_indices = @transform_1, window_bounds = array<i64: 8, 1>}, {pipeline_mode = #tpu.pipeline_mode<synchronous>, transform_indices = @transform_2, window_bounds = array<i64: 10, 32>}, {transform_indices = @transform_3, window_bounds = array<i64: 1, 128>}]} {
    %c0 = arith.constant 0 : index
    %c0_0 = arith.constant 0 : index
    %0 = vector.load %arg1[%c0, %c0_0] : memref<8x32xf32, #tpu.memory_space<vmem>>, vector<8x32xf32>
    %c0_1 = arith.constant 0 : index
    %c0_2 = arith.constant 0 : index
    %1 = vector.load %arg2[%c0_1, %c0_2] : memref<8x1xi32, #tpu.memory_space<vmem>>, vector<8x1xi32>
    %c0_3 = arith.constant 0 : index
    %c0_4 = arith.constant 0 : index
    %2 = vector.load %arg3[%c0_3, %c0_4] : memref<10x32xf32, #tpu.memory_space<vmem>>, vector<10x32xf32>
    %3 = tpu.iota {dimensions = array<i32: 1>} : vector<8x10xi32>
    %4 = vector.broadcast %1 : vector<8x1xi32> to vector<8x10xi32>
    %5 = arith.cmpi eq, %3, %4 : vector<8x10xi32>
    %6 = arith.extui %5 : vector<8x10xi1> to vector<8x10xi32>
    %7 = arith.sitofp %6 : vector<8x10xi32> to vector<8x10xf32>
    %cst = arith.constant dense<0.000000e+00> : vector<8x32xf32>
    %8 = tpu.matmul %7, %2, %cst {dimension_numbers = #tpu.dot_dimension_numbers<[1], [0], [0], [1], [0, 0, 1, 1], [], []>} : vector<8x10xf32>, vector<10x32xf32>, vector<8x32xf32> -> vector<8x32xf32>
    %9 = arith.subf %0, %8 : vector<8x32xf32>
    %10 = arith.mulf %9, %9 : vector<8x32xf32>
    %11 = vector.shape_cast %10 : vector<8x32xf32> to vector<1x8x32xf32>
    %cst_5 = arith.constant dense<0.000000e+00> : vector<1xf32>
    %12 = vector.multi_reduction <add>, %11, %cst_5 [1, 2] : vector<1x8x32xf32> to vector<1xf32>
    %13 = vector.shape_cast %12 : vector<1xf32> to vector<1x1x1xf32>
    %14 = vector.extract %13[0, 0, 0] : f32 from vector<1x1x1xf32>
    %15 = vector.broadcast %14 : f32 to vector<1x128xf32>
    %c0_6 = arith.constant 0 : index
    %c0_7 = arith.constant 0 : index
    %16 = vector.load %arg4[%c0_6, %c0_7] : memref<1x128xf32, #tpu.memory_space<vmem>>, vector<1x128xf32>
    tpu.vector_store %arg4[%c0_6, %c0_7], %15 {strides = array<i32>} : memref<1x128xf32, #tpu.memory_space<vmem>>, vector<1x128xf32>,
    return
  }
  func.func @transform_0(%arg0: i32) -> (i32, i32) {
    %c0_i32 = arith.constant 0 : i32
    %c0_i32_0 = arith.constant 0 : i32
    return %arg0, %c0_i32 : i32, i32
  }
  func.func @transform_1(%arg0: i32) -> (i32, i32) {
    %c0_i32 = arith.constant 0 : i32
    %c0_i32_0 = arith.constant 0 : i32
    return %arg0, %c0_i32 : i32, i32
  }
  func.func @transform_2(%arg0: i32) -> (i32, i32) {
    %c0_i32 = arith.constant 0 : i32
    %c0_i32_0 = arith.constant 0 : i32
    %c0_i32_1 = arith.constant 0 : i32
    return %c0_i32, %c0_i32_0 : i32, i32
  }
  func.func @transform_3(%arg0: i32) -> (i32, i32) {
    %c0_i32 = arith.constant 0 : i32
    %c0_i32_0 = arith.constant 0 : i32
    return %arg0, %c0_i32 : i32, i32
  }
}

</mosaic_0001>

<llo_original>
// kernel: tpu_custom_call.1
$region0: #{tpu_custom_call.1}
  #allocation0 [shape = 'u32[]', space=smem, size = 0x4, offset = 0x4, fixed_abs, tag = 'smem constant byte address 0x4 - core index']
  #allocation1 [shape = 'u32[144,128]{1,0:T(1,128)}', space=vmem, size = 0x12000, scoped, tag = 'internal scratch']
  %s0 = inlined_call_operand.vmem [shape: f32[8,32], index: 0, kind: input, shape index: {}]
  %s1 = inlined_call_operand.vmem [shape: s32[8,1], index: 1, kind: input, shape index: {}]
  %s2 = inlined_call_operand.hbm [shape: f32[10,32], index: 2, kind: input, shape index: {}]
  %s3 = inlined_call_operand.hbm [shape: f32[1,128], index: 3, kind: output, shape index: {}]
  %s4 = sld [smem:[#allocation0]]
  $region26: #{tpu_custom_call.1} parent=0
    _
  %s6 = ssub.s32 1, %s4
  %s7 = scalar_select 0, %s6, %s4
  $region1: #{tpu_custom_call.1} parent=0
    #allocation2 [shape = 'u8[8192]{0}', space=vmem, size = 0x2000, scoped, tag = 'input window, operand 2, single buffered']
    #allocation3 [shape = 's32[1]{0}', space=sflag, size = 0x4, scoped, tag = 'scoped memory for tpu_custom_call.1']
    #allocation4 [shape = 's32[1]{0}', space=sflag, size = 0x4, scoped, tag = 'scoped memory for tpu_custom_call.1']
    #allocation5 [shape = 'u8[512]{0}', space=vmem, size = 0x400, scoped, tag = 'output window, operand 0, single buffered']
    %8 = vsyncpa [#allocation3], 0
    %9 = vsyncpa [#allocation4], 0
    // Predicated region
    $region2: #{tpu_custom_call.1} parent=1 // pred_check
      _
    $region3: #{tpu_custom_call.1} parent=1 // pred_check_branch
      %11 = sbr.rel (0) target = $region5
    $region4: #{tpu_custom_call.1} parent=1 // pred_region
      _
    $region5: #{tpu_custom_call.1} parent=1 // pred_fallthru
      _
    // Predicated region
    $region6: #{tpu_custom_call.1} parent=1 // pred_check
      _
    $region7: #{tpu_custom_call.1} parent=1 // pred_check_branch
      %13 = sbr.rel (0) target = $region9
    $region8: #{tpu_custom_call.1} parent=1 // pred_region
      _
    $region9: #{tpu_custom_call.1} parent=1 // pred_fallthru
      _
    // Predicated region
    $region10: #{tpu_custom_call.1} parent=1 // pred_check
      _
    $region11: #{tpu_custom_call.1} parent=1 // pred_check_branch
      %15 = sbr.rel (0) target = $region13
    $region12: #{tpu_custom_call.1} parent=1 // pred_region
      %s17 = ssub.s32 256, 256
      %18 = vsyncadd [#allocation3], %s17
      %s19 = sshll.u32 [#allocation2], 4
      %s20 = int_to_ptr.vmem [resolvable:$true] %s19
      %25 = dma.hbm_to_vmem [thread:$0]  %s2, 256, %s20, [#allocation3], 128, 128, 8
    $region13: #{tpu_custom_call.1} parent=1 // pred_fallthru
      _
    // Predicated region
    $region14: #{tpu_custom_call.1} parent=1 // pred_check
      _
    $region15: #{tpu_custom_call.1} parent=1 // pred_check_branch
      %27 = sbr.rel (0) target = $region17
    $region16: #{tpu_custom_call.1} parent=1 // pred_region
      %28 = dma.done [#allocation3], 256
    $region17: #{tpu_custom_call.1} parent=1 // pred_fallthru
      _
    %v29 = vld [vmem:[%s0] sm:$0xff]
    %v30 = vld [vmem:[%s1] sm:$0xff]
    %v31 = vld [vmem:[#allocation2] sm:$0xff]
    %v32 = vld [vmem:[#allocation2 + $0x8] sm:$0x3]
    %v33 = vlaneseq
    %v34 = vand.u32 %v33, 127
    %35 = vset.pattern.permute.xlu0 0
    %36 = vperm.xlu0 %35, %v30
    %v37 = vpop.permute.xlu0 %36
    %vm38 = vcmp.eq.s32.totalorder %v34, %v37
    %v39 = vsel %vm38, 1, 0
    %v40 = vcvt.s32.f32 %v39
    %vm41 = vcmask 80896
    %v43 = vsel %vm41, %v40, 0
    %vm45 = vcmask 1041408
    %v47 = vsel %vm45, %v32, 0
    %49 = vmatprep.subr.mxu0 0.0
    %50 = vmatpush1.msra.mxu0 0.0
    %51 = vmatprep.subr.mxu0 0.0
    %52 = vmatpush1.msra.mxu0 0.0
    %53 = vmatprep.subr.mxu0 0.0
    %54 = vmatpush1.msra.mxu0 0.0
    %55 = vmatprep.subr.mxu0 0.0
    %56 = vmatpush1.msra.mxu0 0.0
    %57 = vmatprep.subr.mxu0 0.0
    %58 = vmatpush1.msra.mxu0 0.0
    %59 = vmatprep.subr.mxu0 0.0
    %60 = vmatpush1.msra.mxu0 0.0
    %61 = vmatprep.subr.mxu0 0.0
    %62 = vmatpush1.msra.mxu0 0.0
    %63 = vmatprep.subr.mxu0 0.0
    %64 = vmatpush1.msra.mxu0 0.0
    %65 = vmatprep.subr.mxu0 0.0
    %66 = vmatpush1.msra.mxu0 0.0
    %67 = vmatprep.subr.mxu0 0.0
    %68 = vmatpush1.msra.mxu0 0.0
    %69 = vmatprep.subr.mxu0 0.0
    %70 = vmatpush1.msra.mxu0 0.0
    %71 = vmatprep.subr.mxu0 0.0
    %72 = vmatpush1.msra.mxu0 0.0
    %73 = vmatprep.subr.mxu0 0.0
    %74 = vmatpush1.msra.mxu0 0.0
    %75 = vmatprep.subr.mxu0 0.0
    %76 = vmatpush1.msra.mxu0 0.0
    %77 = vmatprep.subr.mxu0 0.0
    %78 = vmatpush1.msra.mxu0 %v47
    %79 = vmatprep.subr.mxu0 0.0
    %80 = vmatpush1.msra.mxu0 %v31
    %81 = vmatprep.subr.mxu0 0.0
    %82 = vmatpush2.msra.mxu0 0.0
    %83 = vmatprep.subr.mxu0 0.0
    %84 = vmatpush2.msra.mxu0 0.0
    %85 = vmatprep.subr.mxu0 0.0
    %86 = vmatpush2.msra.mxu0 0.0
    %87 = vmatprep.subr.mxu0 0.0
    %88 = vmatpush2.msra.mxu0 0.0
    %89 = vmatprep.subr.mxu0 0.0
    %90 = vmatpush2.msra.mxu0 0.0
    %91 = vmatprep.subr.mxu0 0.0
    %92 = vmatpush2.msra.mxu0 0.0
    %93 = vmatprep.subr.mxu0 0.0
    %94 = vmatpush2.msra.mxu0 0.0
    %95 = vmatprep.subr.mxu0 0.0
    %96 = vmatpush2.msra.mxu0 0.0
    %97 = vmatprep.subr.mxu0 0.0
    %98 = vmatpush2.msra.mxu0 0.0
    %99 = vmatprep.subr.mxu0 0.0
    %100 = vmatpush2.msra.mxu0 0.0
    %101 = vmatprep.subr.mxu0 0.0
    %102 = vmatpush2.msra.mxu0 0.0
    %103 = vmatprep.subr.mxu0 0.0
    %104 = vmatpush2.msra.mxu0 0.0
    %105 = vmatprep.subr.mxu0 0.0
    %106 = vmatpush2.msra.mxu0 0.0
    %107 = vmatprep.subr.mxu0 0.0
    %108 = vmatpush2.msra.mxu0 0.0
    %109 = vmatprep.subr.mxu0 0.0
    %110 = vmatpush2.msra.mxu0 0.0
    %111 = vmatprep.subr.mxu0 0.0
    %112 = vmatpush2.msra.mxu0 0.0
    %113 = vmatprep.mubr.f32.mxu0 0.0
    %114 = vmatmul.mubr.f32.gmra.mxu0 %v43
    %v115 = vpop.f32.mrf.mxu0
    %v116 = vadd.f32 0.0, %v115
    %v117 = vpop.f32.mrf.mxu0
    %118 = vdwg.mxu0
    %v119 = vsub.f32 %v29, %v116
    %v120 = vmul.f32 %v119, %v119
    %vm121 = vcmask 261120
    %v122 = vsel %vm121, %v120, 0.0
    %123 = vadd.xlane.f32.xlu0 %v122
    %v124 = vpop.xlane.xlu0 %123
    %v125 = vrot.slane %v124, 4
    %v126 = vadd.f32 %v124, %v125
    %v127 = vrot.slane %v126, 2
    %v128 = vadd.f32 %v126, %v127
    %v129 = vrot.slane %v128, 1
    %v130 = vadd.f32 %v128, %v129
    %s131 = vtos %v130
    %v132 = vstv %s131
    %133 = vst [vmem:[#allocation5] sm:$0x1] %v132
    // Predicated region
    $region18: #{tpu_custom_call.1} parent=1 // pred_check
      _
    $region19: #{tpu_custom_call.1} parent=1 // pred_check_branch
      %135 = sbr.rel (0) target = $region21
    $region20: #{tpu_custom_call.1} parent=1 // pred_region
      %s137 = ssub.s32 16, 16
      %138 = vsyncadd [#allocation4], %s137
      %s140 = sshll.u32 [#allocation5], 4
      %s141 = int_to_ptr.vmem [resolvable:$true] %s140
      %143 = dma.vmem_to_hbm [thread:$0]  %s141, 16, %s3, [#allocation4]
    $region21: #{tpu_custom_call.1} parent=1 // pred_fallthru
      _
    // Predicated region
    $region22: #{tpu_custom_call.1} parent=1 // pred_check
      _
    $region23: #{tpu_custom_call.1} parent=1 // pred_check_branch
      %145 = sbr.rel (0) target = $region25
    $region24: #{tpu_custom_call.1} parent=1 // pred_region
      %146 = dma.done [#allocation4], 16
    $region25: #{tpu_custom_call.1} parent=1 // pred_fallthru
      _
    %147 = vsyncpa [#allocation3], 1
    %148 = vsyncpa [#allocation4], 1

</llo_original>
